<compile_context>
chip_gen: v6e
topology: v6e:2x2x1
jax: 0.10.0
libtpu: 0.0.40
codegen_flags: <defaults>
</compile_context>

<pallas_src>
import jax
import jax.numpy as jnp
from jax.experimental import pallas as pl
from jax.experimental.pallas import tpu as pltpu


def _era_classifier_kernel(x_ref, w_ref, b_ref, o_ref):
    x = x_ref[...].astype(jnp.float32)                    # (TILE_B, D), f32
    w = w_ref[...]                                         # (1, D), f32
    b = b_ref[0]                                           # scalar f32 (SMEM)
    # VPU multiply + lane (XLU) reduce in f32: no relayout of the streamed
    # tile, exact f32 accumulation.
    logits = jnp.sum(x * w, axis=-1, keepdims=True) + b    # (TILE_B, 1), f32
    o_ref[...] = jax.nn.sigmoid(logits).astype(o_ref.dtype)


def _vmem_capacity_bytes():
    try:
        return int(pltpu.get_tpu_info().vmem_capacity_bytes)
    except Exception:
        return 64 * 1024 * 1024   # conservative default: v7x per-TC VMEM


def _choose_tile_b(B, D, itemsize, per_buffer_budget):
    """Rows per x tile.

    * per-buffer footprint <= budget,
    * small batches: one exact (B, D) block (no alignment / ragged handling),
    * large batches: multiples of 128 (8 if tiny) and >= ~4 grid steps so
      v7x's two TensorCores both stream and the DMA pipeline has depth.
    """
    bytes_per_row = max(1, D * itemsize)
    cap = per_buffer_budget // bytes_per_row
    cap = max(8, (cap // 8) * 8)
    if cap >= 128:
        cap = (cap // 128) * 128

    if B <= min(cap, 512):
        return B                                  # single exact block

    want = pl.cdiv(B, 4)                          # aim for >= 4 tiles
    unit = 128 if want >= 128 else 8
    want = max(unit, pl.cdiv(want, unit) * unit)
    return max(8, min(cap, want))


def era_activation_classifier(x, weight, bias):
    """sigmoid(x @ weight.T + bias).

    x: (..., D) f32/bf16; weight: (1, D) (PyTorch Linear layout); bias: (1,).
    Returns shape (..., 1) in x.dtype.
    """
    *lead, D = x.shape
    x2 = x.reshape(-1, D)
    B = x2.shape[0]
    itemsize = jnp.dtype(x2.dtype).itemsize

    w_row = weight.reshape(1, D).astype(jnp.float32)   # tiny, VMEM-resident, f32
    b_vec = bias.reshape(1).astype(jnp.float32)        # scalar in SMEM

    vmem_cap = _vmem_capacity_bytes()
    per_buffer_budget = max(2 * 1024 * 1024, vmem_cap // 8)
    tile_b = _choose_tile_b(B, D, itemsize, per_buffer_budget)
    num_tiles = pl.cdiv(B, tile_b)

    # VMEM accounting: x tiles (double-buffered), f32 upcast/product temps,
    # output tiles, weight, slack.
    x_tile_bytes = tile_b * D * itemsize
    f32_tile_bytes = tile_b * D * 4
    out_tile_bytes = tile_b * itemsize
    work_bytes = 2 * f32_tile_bytes + 2 * out_tile_bytes + D * 4 + (2 << 20)
    x_buffers = 2 if (2 * x_tile_bytes + work_bytes) <= int(0.8 * vmem_cap) else 1
    need = x_buffers * x_tile_bytes + work_bytes
    vmem_limit = int(min(max(need, 16 * 1024 * 1024), int(0.85 * vmem_cap)))

    if x_buffers == 2:
        x_spec = pl.BlockSpec((tile_b, D), lambda i: (i, 0))
    else:
        # Huge-D fallback: single buffer instead of overshooting VMEM.
        x_spec = pl.BlockSpec((tile_b, D), lambda i: (i, 0),
                              pipeline_mode=pl.Buffered(1))

    cost = pl.CostEstimate(
        flops=2 * B * D,
        transcendentals=B,                                   # one sigmoid per row
        bytes_accessed=B * D * itemsize + B * itemsize + D * 4 + 4,
    )

    out = pl.pallas_call(
        _era_classifier_kernel,
        out_shape=jax.ShapeDtypeStruct((B, 1), x2.dtype),
        grid=(num_tiles,),
        in_specs=[
            x_spec,                                              # stream x tiles
            pl.BlockSpec((1, D), lambda i: (0, 0)),              # weight (f32, resident)
            pl.BlockSpec(memory_space=pltpu.MemorySpace.SMEM),   # bias scalar
        ],
        out_specs=pl.BlockSpec((tile_b, 1), lambda i: (i, 0)),
        compiler_params=pltpu.CompilerParams(
            dimension_semantics=("parallel",),                   # v7x: 2 TCs split grid
            vmem_limit_bytes=vmem_limit,
        ),
        cost_estimate=cost,
    )(x2, w_row, b_vec)

    return out.reshape(*lead, 1)


if __name__ == "__main__":
    key = jax.random.PRNGKey(0)
    B, D = 4, 32  # small shapes: batch=4, input_dim=32

    kx, kw, kb = jax.random.split(key, 3)
    x = jax.random.normal(kx, (B, D), dtype=jnp.float32)

    # Deterministic PyTorch-style Linear init: U(-1/sqrt(D), 1/sqrt(D))
    bound = 1.0 / (D ** 0.5)
    weight = jax.random.uniform(kw, (1, D), minval=-bound, maxval=bound,
                                dtype=jnp.float32)
    bias = jax.random.uniform(kb, (1,), minval=-bound, maxval=bound,
                              dtype=jnp.float32)

    out = era_activation_classifier(x, weight, bias)
    out = jax.block_until_ready(out)

    # Pure-JAX reference with the same exact-f32 math as the kernel.
    ref = jax.nn.sigmoid(jnp.sum(x * weight, axis=-1, keepdims=True) + bias)
    assert out.shape == (B, 1)
    assert jnp.allclose(out, ref, atol=1e-5, rtol=1e-5)

    print("KERNEL_OK")
</pallas_src>

<mosaic_0001>
module attributes {stable_mosaic.version = 11 : i64} {
  func.func @_era_classifier_kernel(%arg0: i32, %arg1: memref<4x32xf32, #tpu.memory_space<vmem>>, %arg2: memref<1x32xf32, #tpu.memory_space<vmem>>, %arg3: memref<1xf32, #tpu.memory_space<smem>>, %arg4: memref<4x1xf32, #tpu.memory_space<vmem>>) attributes {dimension_semantics = [#tpu.dimension_semantics<parallel>], iteration_bounds = array<i64: 1>, scalar_prefetch = 0 : i64, scratch_operands = 0 : i64, tpu.core_type = #tpu.core_type<tc>, window_params = [{transform_indices = @transform_0, window_bounds = array<i64: 4, 32>}, {pipeline_mode = #tpu.pipeline_mode<synchronous>, transform_indices = @transform_1, window_bounds = array<i64: 1, 32>}, {transform_indices = @transform_2, window_bounds = array<i64: 1>}, {transform_indices = @transform_3, window_bounds = array<i64: 4, 1>}]} {
    %c0 = arith.constant 0 : index
    %c0_0 = arith.constant 0 : index
    %0 = vector.load %arg1[%c0, %c0_0] : memref<4x32xf32, #tpu.memory_space<vmem>>, vector<4x32xf32>
    %c0_1 = arith.constant 0 : index
    %c0_2 = arith.constant 0 : index
    %1 = vector.load %arg2[%c0_1, %c0_2] : memref<1x32xf32, #tpu.memory_space<vmem>>, vector<1x32xf32>
    %c0_3 = arith.constant 0 : index
    %2 = memref.load %arg3[%c0_3] : memref<1xf32, #tpu.memory_space<smem>>
    %3 = vector.broadcast %1 : vector<1x32xf32> to vector<4x32xf32>
    %4 = arith.mulf %0, %3 : vector<4x32xf32>
    %cst = arith.constant dense<0.000000e+00> : vector<4xf32>
    %5 = vector.multi_reduction <add>, %4, %cst [1] : vector<4x32xf32> to vector<4xf32>
    %6 = vector.shape_cast %5 : vector<4xf32> to vector<4x1xf32>
    %7 = vector.broadcast %2 : f32 to vector<4x1xf32>
    %8 = arith.addf %6, %7 : vector<4x1xf32>
    %9 = arith.negf %8 : vector<4x1xf32>
    %10 = math.exp %9 : vector<4x1xf32>
    %cst_4 = arith.constant 1.000000e+00 : f32
    %11 = vector.broadcast %cst_4 : f32 to vector<4x1xf32>
    %12 = arith.addf %11, %10 : vector<4x1xf32>
    %13 = arith.divf %11, %12 : vector<4x1xf32>
    %c0_5 = arith.constant 0 : index
    %c0_6 = arith.constant 0 : index
    %14 = vector.load %arg4[%c0_5, %c0_6] : memref<4x1xf32, #tpu.memory_space<vmem>>, vector<4x1xf32>
    tpu.vector_store %arg4[%c0_5, %c0_6], %13 {strides = array<i32>} : memref<4x1xf32, #tpu.memory_space<vmem>>, vector<4x1xf32>,
    return
  }
  func.func @transform_0(%arg0: i32) -> (i32, i32) {
    %c0_i32 = arith.constant 0 : i32
    %c0_i32_0 = arith.constant 0 : i32
    return %arg0, %c0_i32 : i32, i32
  }
  func.func @transform_1(%arg0: i32) -> (i32, i32) {
    %c0_i32 = arith.constant 0 : i32
    %c0_i32_0 = arith.constant 0 : i32
    %c0_i32_1 = arith.constant 0 : i32
    return %c0_i32, %c0_i32_0 : i32, i32
  }
  func.func @transform_2(%arg0: i32) -> i32 {
    %c0_i32 = arith.constant 0 : i32
    %c0_i32_0 = arith.constant 0 : i32
    return %c0_i32 : i32
  }
  func.func @transform_3(%arg0: i32) -> (i32, i32) {
    %c0_i32 = arith.constant 0 : i32
    %c0_i32_0 = arith.constant 0 : i32
    return %arg0, %c0_i32 : i32, i32
  }
}

</mosaic_0001>

<llo_original>
// kernel: tpu_custom_call.1
$region0: #{tpu_custom_call.1}
  #allocation0 [shape = 'u32[]', space=smem, size = 0x4, offset = 0x4, fixed_abs, tag = 'smem constant byte address 0x4 - core index']
  #allocation1 [shape = 'u32[144,128]{1,0:T(1,128)}', space=vmem, size = 0x12000, scoped, tag = 'internal scratch']
  #allocation2 [shape = 'f32[1]{0:T(128)S(6)}', space=smem, size = 0x200, scoped, tag = 'scoped memory for tpu_custom_call.1']
  %s0 = inlined_call_operand.hbm [shape: f32[4,32], index: 0, kind: input, shape index: {}]
  %s1 = inlined_call_operand.vmem [shape: f32[1,32], index: 1, kind: input, shape index: {}]
  %s2 = inlined_call_operand.<no memory space> [shape: f32[1], index: 2, kind: input, shape index: {}]
  %s3 = inlined_call_operand.vmem [shape: f32[4,1], index: 3, kind: output, shape index: {}]
  %s4 = sld [smem:[#allocation0]]
  $region26: #{tpu_custom_call.1} parent=0
    _
  %s6 = ssub.s32 1, %s4
  %s7 = scalar_select 0, %s6, %s4
  %8 = sst [smem:[#allocation2]] %s2
  $region1: #{tpu_custom_call.1} parent=0
    #allocation3 [shape = 'u8[2048]{0}', space=vmem, size = 0x800, scoped, tag = 'input window, operand 0, single buffered']
    #allocation4 [shape = 's32[1]{0}', space=sflag, size = 0x4, scoped, tag = 'scoped memory for tpu_custom_call.1']
    %9 = vsyncpa [#allocation4], 0
    // Predicated region
    $region2: #{tpu_custom_call.1} parent=1 // pred_check
      _
    $region3: #{tpu_custom_call.1} parent=1 // pred_check_branch
      %11 = sbr.rel (0) target = $region5
    $region4: #{tpu_custom_call.1} parent=1 // pred_region
      %s13 = ssub.s32 64, 64
      %14 = vsyncadd [#allocation4], %s13
      %s16 = sshll.u32 [#allocation3], 4
      %s17 = int_to_ptr.vmem [resolvable:$true] %s16
      %19 = dma.hbm_to_vmem [thread:$0]  %s0, 64, %s17, [#allocation4]
    $region5: #{tpu_custom_call.1} parent=1 // pred_fallthru
      _
    // Predicated region
    $region6: #{tpu_custom_call.1} parent=1 // pred_check
      _
    $region7: #{tpu_custom_call.1} parent=1 // pred_check_branch
      %21 = sbr.rel (0) target = $region9
    $region8: #{tpu_custom_call.1} parent=1 // pred_region
      _
    $region9: #{tpu_custom_call.1} parent=1 // pred_fallthru
      _
    // Predicated region
    $region10: #{tpu_custom_call.1} parent=1 // pred_check
      _
    $region11: #{tpu_custom_call.1} parent=1 // pred_check_branch
      %23 = sbr.rel (0) target = $region13
    $region12: #{tpu_custom_call.1} parent=1 // pred_region
      _
    $region13: #{tpu_custom_call.1} parent=1 // pred_fallthru
      _
    // Predicated region
    $region14: #{tpu_custom_call.1} parent=1 // pred_check
      _
    $region15: #{tpu_custom_call.1} parent=1 // pred_check_branch
      %25 = sbr.rel (0) target = $region17
    $region16: #{tpu_custom_call.1} parent=1 // pred_region
      %26 = dma.done [#allocation4], 64
    $region17: #{tpu_custom_call.1} parent=1 // pred_fallthru
      _
    %v27 = vld [vmem:[#allocation3] sm:$0xf]
    %v28 = vld [vmem:[%s1] sm:$0x1]
    %s29 = sld [smem:[#allocation2]]
    %v31 = vlaneseq
    %v32 = vshrl.u32 %v31, 7
    %v33 = vsub.s32 0, %v32
    %v34 = vrot.slane %v28, %v33
    %v36 = vmul.f32 %v27, %v34
    %vm37 = vcmask 257024
    %v38 = vsel %vm37, %v36, 0.0
    %39 = vadd.xlane.f32.xlu0 %v38
    %v40 = vpop.xlane.xlu0 %39
    %v41 = vstv %s29
    %v42 = vadd.f32 %v40, %v41
    %v43 = vxor.u32 %v42, 2147483648
    %v44 = vmul.f32 %v43, 1.442695
    %v45 = vpow.pop %v44
    %v46 = vadd.f32 %v45, 1.0
    %v47 = vrcp.pop %v46
    %v48 = vmul.f32 1.0, %v47
    %vm49 = vcmask 3072
    %50 = vst.msk [vmem:[%s3] sm:$0xf] %vm49, %v48
    // Predicated region
    $region18: #{tpu_custom_call.1} parent=1 // pred_check
      _
    $region19: #{tpu_custom_call.1} parent=1 // pred_check_branch
      %52 = sbr.rel (0) target = $region21
    $region20: #{tpu_custom_call.1} parent=1 // pred_region
      _
    $region21: #{tpu_custom_call.1} parent=1 // pred_fallthru
      _
    // Predicated region
    $region22: #{tpu_custom_call.1} parent=1 // pred_check
      _
    $region23: #{tpu_custom_call.1} parent=1 // pred_check_branch
      %54 = sbr.rel (0) target = $region25
    $region24: #{tpu_custom_call.1} parent=1 // pred_region
      _
    $region25: #{tpu_custom_call.1} parent=1 // pred_fallthru
      _
    %55 = vsyncpa [#allocation4], 1

</llo_original>
